<compile_context>
chip_gen: v6e
topology: v6e:2x2x1
jax: 0.10.0
libtpu: 0.0.40
codegen_flags: <defaults>
</compile_context>

<pallas_src>
import jax
import jax.numpy as jnp
from jax.experimental import pallas as pl
from jax.experimental.pallas import tpu as pltpu


def _round_up(n, m):
    return ((n + m - 1) // m) * m


def _skip_linear_kernel(x_ref, w_ref, b_ref, o_ref):
    # x_ref: (TM, Hp) f32 | w_ref: (Hp, Hp) bf16 | b_ref: (1, Hp) f32
    # o_ref: (TM, Hp) f32
    x = x_ref[...]
    # MXU-native bf16 inputs, f32 accumulation.
    y = jnp.dot(x.astype(jnp.bfloat16), w_ref[...],
                preferred_element_type=jnp.float32)
    # Residual (the SkipConnection add) + bias in f32, single downcast.
    o_ref[...] = (x.astype(jnp.float32) + y + b_ref[...]).astype(o_ref.dtype)


def skip_connection_linear(x, w, b, *, tm=None):
    """SkipConnection(Linear):  out = x + x @ w + b.

    x: (..., H) float32, w: (H, H), b: (H,).
    """
    orig_shape = x.shape
    H = orig_shape[-1]
    x2 = x.reshape(-1, H)
    N = x2.shape[0]

    # Lane-dense layout: pad hidden dim up to a multiple of 128 lanes.
    Hp = _round_up(max(H, 128), 128)

    # Row tile: target ~2 MiB of f32 per x tile, multiple of 8 sublanes,
    # clamped to [64, 2048] and to the (padded) row count.
    if tm is None:
        tm = (2 << 20) // (Hp * 4)
        tm = max(64, min(2048, (tm // 8) * 8))
    tm = max(8, (tm // 8) * 8)
    tm = min(tm, _round_up(N, 8))
    Np = _round_up(N, tm)

    # Zero padding (zeros are required: padded K-columns must contribute 0).
    x_p = x2 if (Np == N and Hp == H) else jnp.pad(x2, ((0, Np - N), (0, Hp - H)))
    w_bf16 = w.astype(jnp.bfloat16)
    w_p = w_bf16 if Hp == H else jnp.pad(w_bf16, ((0, Hp - H), (0, Hp - H)))
    b_f32 = b.astype(jnp.float32).reshape(1, H)
    b_p = b_f32 if Hp == H else jnp.pad(b_f32, ((0, 0), (0, Hp - H)))

    grid = (Np // tm,)

    # VMEM budget: resident bf16 W + bias + double-buffered x and out tiles.
    vmem_needed = (Hp * Hp * 2 + Hp * 4
                   + 2 * tm * Hp * 4      # double-buffered x (f32)
                   + 2 * tm * Hp * 4      # double-buffered out (f32)
                   + (2 << 20))           # headroom
    vmem_limit = int(min(max(vmem_needed, 32 << 20), 100 << 20))

    cost = pl.CostEstimate(
        flops=2 * Np * Hp * Hp,
        transcendentals=0,
        bytes_accessed=2 * Np * Hp * 4 + Hp * Hp * 2 + Hp * 4,
    )

    out = pl.pallas_call(
        _skip_linear_kernel,
        out_shape=jax.ShapeDtypeStruct((Np, Hp), x.dtype),
        grid_spec=pltpu.PrefetchScalarGridSpec(
            num_scalar_prefetch=0,
            grid=grid,
            in_specs=[
                pl.BlockSpec((tm, Hp), lambda i: (i, 0)),   # x tile (pipelined)
                pl.BlockSpec((Hp, Hp), lambda i: (0, 0)),   # W resident across grid
                pl.BlockSpec((1, Hp), lambda i: (0, 0)),    # bias resident
            ],
            out_specs=pl.BlockSpec((tm, Hp), lambda i: (i, 0)),
        ),
        compiler_params=pltpu.CompilerParams(
            dimension_semantics=("parallel",),
            vmem_limit_bytes=vmem_limit,
        ),
        cost_estimate=cost,
    )(x_p, w_p, b_p)

    if Np == N and Hp == H:
        return out.reshape(orig_shape)
    return out[:N, :H].reshape(orig_shape)


if __name__ == "__main__":
    key = jax.random.PRNGKey(0)
    batch, seq, hidden = 2, 8, 32

    kx, kw, kb = jax.random.split(key, 3)
    x = jax.random.normal(kx, (batch, seq, hidden), dtype=jnp.float32)
    # deterministic "Linear(hidden, hidden)" parameters wrapped by SkipConnection
    w = jax.random.normal(kw, (hidden, hidden), dtype=jnp.float32) * (1.0 / hidden ** 0.5)
    b = jax.random.normal(kb, (hidden,), dtype=jnp.float32) * 0.01

    out = skip_connection_linear(x, w, b)
    out = jax.block_until_ready(out)

    # pure-JAX f32 reference: input + module(input). Kernel uses bf16 MXU
    # operands (f32 accumulation), so tolerances are bf16-appropriate.
    ref = x + (jnp.einsum("bsh,hk->bsk", x, w) + b)
    assert out.shape == ref.shape, "shape mismatch vs reference"
    assert jnp.allclose(out, ref, atol=3e-2, rtol=3e-2), "mismatch vs reference"

    print("KERNEL_OK")
</pallas_src>

<mosaic_0001>
module attributes {stable_mosaic.version = 11 : i64} {
  func.func @_skip_linear_kernel(%arg0: i32, %arg1: memref<16x128xf32, #tpu.memory_space<vmem>>, %arg2: memref<128x128xbf16, #tpu.memory_space<vmem>>, %arg3: memref<1x128xf32, #tpu.memory_space<vmem>>, %arg4: memref<16x128xf32, #tpu.memory_space<vmem>>) attributes {dimension_semantics = [#tpu.dimension_semantics<parallel>], iteration_bounds = array<i64: 1>, scalar_prefetch = 0 : i64, scratch_operands = 0 : i64, tpu.core_type = #tpu.core_type<tc>, window_params = [{transform_indices = @transform_0, window_bounds = array<i64: 16, 128>}, {pipeline_mode = #tpu.pipeline_mode<synchronous>, transform_indices = @transform_1, window_bounds = array<i64: 128, 128>}, {pipeline_mode = #tpu.pipeline_mode<synchronous>, transform_indices = @transform_2, window_bounds = array<i64: 1, 128>}, {transform_indices = @transform_3, window_bounds = array<i64: 16, 128>}]} {
    %c0 = arith.constant 0 : index
    %c0_0 = arith.constant 0 : index
    %0 = vector.load %arg1[%c0, %c0_0] : memref<16x128xf32, #tpu.memory_space<vmem>>, vector<16x128xf32>
    %1 = arith.truncf %0 : vector<16x128xf32> to vector<16x128xbf16>
    %c0_1 = arith.constant 0 : index
    %c0_2 = arith.constant 0 : index
    %2 = vector.load %arg2[%c0_1, %c0_2] : memref<128x128xbf16, #tpu.memory_space<vmem>>, vector<128x128xbf16>
    %cst = arith.constant dense<0.000000e+00> : vector<16x128xf32>
    %3 = tpu.matmul %1, %2, %cst {dimension_numbers = #tpu.dot_dimension_numbers<[1], [0], [0], [1], [0, 0, 1, 1], [], []>} : vector<16x128xbf16>, vector<128x128xbf16>, vector<16x128xf32> -> vector<16x128xf32>
    %4 = arith.addf %0, %3 : vector<16x128xf32>
    %c0_3 = arith.constant 0 : index
    %c0_4 = arith.constant 0 : index
    %5 = vector.load %arg3[%c0_3, %c0_4] : memref<1x128xf32, #tpu.memory_space<vmem>>, vector<1x128xf32>
    %6 = vector.broadcast %5 : vector<1x128xf32> to vector<16x128xf32>
    %7 = arith.addf %4, %6 : vector<16x128xf32>
    %c0_5 = arith.constant 0 : index
    %c0_6 = arith.constant 0 : index
    %8 = vector.load %arg4[%c0_5, %c0_6] : memref<16x128xf32, #tpu.memory_space<vmem>>, vector<16x128xf32>
    tpu.vector_store %arg4[%c0_5, %c0_6], %7 {strides = array<i32>} : memref<16x128xf32, #tpu.memory_space<vmem>>, vector<16x128xf32>,
    return
  }
  func.func @transform_0(%arg0: i32) -> (i32, i32) {
    %c0_i32 = arith.constant 0 : i32
    %c0_i32_0 = arith.constant 0 : i32
    return %arg0, %c0_i32 : i32, i32
  }
  func.func @transform_1(%arg0: i32) -> (i32, i32) {
    %c0_i32 = arith.constant 0 : i32
    %c0_i32_0 = arith.constant 0 : i32
    %c0_i32_1 = arith.constant 0 : i32
    return %c0_i32, %c0_i32_0 : i32, i32
  }
  func.func @transform_2(%arg0: i32) -> (i32, i32) {
    %c0_i32 = arith.constant 0 : i32
    %c0_i32_0 = arith.constant 0 : i32
    %c0_i32_1 = arith.constant 0 : i32
    return %c0_i32, %c0_i32_0 : i32, i32
  }
  func.func @transform_3(%arg0: i32) -> (i32, i32) {
    %c0_i32 = arith.constant 0 : i32
    %c0_i32_0 = arith.constant 0 : i32
    return %arg0, %c0_i32 : i32, i32
  }
}

</mosaic_0001>

<llo_original>
// kernel: tpu_custom_call.1
$region0: #{tpu_custom_call.1}
  #allocation0 [shape = 'u32[]', space=smem, size = 0x4, offset = 0x4, fixed_abs, tag = 'smem constant byte address 0x4 - core index']
  #allocation1 [shape = 'u32[144,128]{1,0:T(1,128)}', space=vmem, size = 0x12000, scoped, tag = 'internal scratch']
  %s0 = inlined_call_operand.hbm [shape: f32[16,128], index: 0, kind: input, shape index: {}]
  %s1 = inlined_call_operand.hbm [shape: bf16[128,128], index: 1, kind: input, shape index: {}]
  %s2 = inlined_call_operand.vmem [shape: f32[1,128], index: 2, kind: input, shape index: {}]
  %s3 = inlined_call_operand.hbm [shape: f32[16,128], index: 3, kind: output, shape index: {}]
  %s4 = sld [smem:[#allocation0]]
  $region30: #{tpu_custom_call.1} parent=0
    _
  %s6 = ssub.s32 1, %s4
  %s7 = scalar_select 0, %s6, %s4
  $region1: #{tpu_custom_call.1} parent=0
    #allocation2 [shape = 'u8[8192]{0}', space=vmem, size = 0x2000, scoped, tag = 'input window, operand 0, single buffered']
    #allocation3 [shape = 's32[1]{0}', space=sflag, size = 0x4, scoped, tag = 'scoped memory for tpu_custom_call.1']
    #allocation4 [shape = 's32[1]{0}', space=sflag, size = 0x4, scoped, tag = 'scoped memory for tpu_custom_call.1']
    #allocation5 [shape = 'u8[32768]{0}', space=vmem, size = 0x8000, scoped, tag = 'input window, operand 1, single buffered']
    #allocation6 [shape = 's32[1]{0}', space=sflag, size = 0x4, scoped, tag = 'scoped memory for tpu_custom_call.1']
    #allocation7 [shape = 'u8[8192]{0}', space=vmem, size = 0x2000, scoped, tag = 'output window, operand 0, single buffered']
    %8 = vsyncpa [#allocation3], 0
    %9 = vsyncpa [#allocation6], 0
    %10 = vsyncpa [#allocation4], 0
    // Predicated region
    $region2: #{tpu_custom_call.1} parent=1 // pred_check
      _
    $region3: #{tpu_custom_call.1} parent=1 // pred_check_branch
      %12 = sbr.rel (0) target = $region5
    $region4: #{tpu_custom_call.1} parent=1 // pred_region
      %s14 = ssub.s32 256, 256
      %15 = vsyncadd [#allocation3], %s14
      %s16 = sshll.u32 [#allocation2], 4
      %s17 = int_to_ptr.vmem [resolvable:$true] %s16
      %22 = dma.hbm_to_vmem [thread:$0]  %s0, 256, %s17, [#allocation3], 128, 128, 8
    $region5: #{tpu_custom_call.1} parent=1 // pred_fallthru
      _
    // Predicated region
    $region6: #{tpu_custom_call.1} parent=1 // pred_check
      _
    $region7: #{tpu_custom_call.1} parent=1 // pred_check_branch
      %24 = sbr.rel (0) target = $region9
    $region8: #{tpu_custom_call.1} parent=1 // pred_region
      %s26 = ssub.s32 1024, 1024
      %27 = vsyncadd [#allocation6], %s26
      %s28 = sshll.u32 [#allocation5], 4
      %s29 = int_to_ptr.vmem [resolvable:$true] %s28
      %34 = dma.hbm_to_vmem [thread:$0]  %s1, 1024, %s29, [#allocation6], 64, 64, 4
    $region9: #{tpu_custom_call.1} parent=1 // pred_fallthru
      _
    // Predicated region
    $region10: #{tpu_custom_call.1} parent=1 // pred_check
      _
    $region11: #{tpu_custom_call.1} parent=1 // pred_check_branch
      %36 = sbr.rel (0) target = $region13
    $region12: #{tpu_custom_call.1} parent=1 // pred_region
      _
    $region13: #{tpu_custom_call.1} parent=1 // pred_fallthru
      _
    // Predicated region
    $region14: #{tpu_custom_call.1} parent=1 // pred_check
      _
    $region15: #{tpu_custom_call.1} parent=1 // pred_check_branch
      %38 = sbr.rel (0) target = $region17
    $region16: #{tpu_custom_call.1} parent=1 // pred_region
      %39 = dma.done [#allocation3], 256
    $region17: #{tpu_custom_call.1} parent=1 // pred_fallthru
      _
    // Predicated region
    $region18: #{tpu_custom_call.1} parent=1 // pred_check
      _
    $region19: #{tpu_custom_call.1} parent=1 // pred_check_branch
      %41 = sbr.rel (0) target = $region21
    $region20: #{tpu_custom_call.1} parent=1 // pred_region
      %42 = dma.done [#allocation6], 1024
    $region21: #{tpu_custom_call.1} parent=1 // pred_fallthru
      _
    %v44 = vld [vmem:[#allocation2] sm:$0xff]
    %v45 = vld [vmem:[#allocation2 + $0x8] sm:$0xff]
    %v46 = vpack.c.bf16 %v45, %v44
    %v47 = vld [vmem:[#allocation5] sm:$0xf]
    %v48 = vld [vmem:[#allocation5 + $0x4] sm:$0xf]
    %v49 = vld [vmem:[#allocation5 + $0x8] sm:$0xf]
    %v50 = vld [vmem:[#allocation5 + $0xc] sm:$0xf]
    %v51 = vld [vmem:[#allocation5 + $0x10] sm:$0xf]
    %v52 = vld [vmem:[#allocation5 + $0x14] sm:$0xf]
    %v53 = vld [vmem:[#allocation5 + $0x18] sm:$0xf]
    %v54 = vld [vmem:[#allocation5 + $0x1c] sm:$0xf]
    %v55 = vld [vmem:[#allocation5 + $0x20] sm:$0xf]
    %v56 = vld [vmem:[#allocation5 + $0x24] sm:$0xf]
    %v57 = vld [vmem:[#allocation5 + $0x28] sm:$0xf]
    %v58 = vld [vmem:[#allocation5 + $0x2c] sm:$0xf]
    %v59 = vld [vmem:[#allocation5 + $0x30] sm:$0xf]
    %v60 = vld [vmem:[#allocation5 + $0x34] sm:$0xf]
    %v61 = vld [vmem:[#allocation5 + $0x38] sm:$0xf]
    %v62 = vld [vmem:[#allocation5 + $0x3c] sm:$0xf]
    %v79 = vunpack.c.l.b16 %v47
    %v80 = vunpack.c.l.b16 %v48
    %v81 = vunpack.c.l.b16 %v49
    %v82 = vunpack.c.l.b16 %v50
    %v83 = vunpack.c.l.b16 %v51
    %v84 = vunpack.c.l.b16 %v52
    %v85 = vunpack.c.l.b16 %v53
    %v86 = vunpack.c.l.b16 %v54
    %v87 = vunpack.c.l.b16 %v55
    %v88 = vunpack.c.l.b16 %v56
    %v89 = vunpack.c.l.b16 %v57
    %v90 = vunpack.c.l.b16 %v58
    %v91 = vunpack.c.l.b16 %v59
    %v92 = vunpack.c.l.b16 %v60
    %v93 = vunpack.c.l.b16 %v61
    %v94 = vunpack.c.l.b16 %v62
    %v95 = vpack.c.b16 %v80, %v79
    %v96 = vpack.c.b16 %v82, %v81
    %v97 = vpack.c.b16 %v84, %v83
    %v98 = vpack.c.b16 %v86, %v85
    %v99 = vpack.c.b16 %v88, %v87
    %v100 = vpack.c.b16 %v90, %v89
    %v101 = vpack.c.b16 %v92, %v91
    %v102 = vpack.c.b16 %v94, %v93
    %111 = vmatprep.subr.bf16.mxu0 0
    %112 = vmatpush1.bf16.msra.mxu0 %v102
    %113 = vmatprep.subr.bf16.mxu0 0
    %114 = vmatpush1.bf16.msra.mxu0 %v101
    %115 = vmatprep.subr.bf16.mxu0 0
    %116 = vmatpush1.bf16.msra.mxu0 %v100
    %117 = vmatprep.subr.bf16.mxu0 0
    %118 = vmatpush1.bf16.msra.mxu0 %v99
    %119 = vmatprep.subr.bf16.mxu0 0
    %120 = vmatpush1.bf16.msra.mxu0 %v98
    %121 = vmatprep.subr.bf16.mxu0 0
    %122 = vmatpush1.bf16.msra.mxu0 %v97
    %123 = vmatprep.subr.bf16.mxu0 0
    %124 = vmatpush1.bf16.msra.mxu0 %v96
    %125 = vmatprep.subr.bf16.mxu0 0
    %126 = vmatpush1.bf16.msra.mxu0 %v95
    %127 = vmatprep.subr.bf16.mxu0 0
    %128 = vmatpush2.bf16.msra.mxu0 0
    %129 = vmatprep.subr.bf16.mxu0 0
    %130 = vmatpush2.bf16.msra.mxu0 0
    %131 = vmatprep.subr.bf16.mxu0 0
    %132 = vmatpush2.bf16.msra.mxu0 0
    %133 = vmatprep.subr.bf16.mxu0 0
    %134 = vmatpush2.bf16.msra.mxu0 0
    %135 = vmatprep.subr.bf16.mxu0 0
    %136 = vmatpush2.bf16.msra.mxu0 0
    %137 = vmatprep.subr.bf16.mxu0 0
    %138 = vmatpush2.bf16.msra.mxu0 0
    %139 = vmatprep.subr.bf16.mxu0 0
    %140 = vmatpush2.bf16.msra.mxu0 0
    %141 = vmatprep.subr.bf16.mxu0 0
    %142 = vmatpush2.bf16.msra.mxu0 0
    %143 = vmatprep.mubr.bf16.mxu0 0
    %144 = vmatmul.mubr.bf16.gmra.mxu0 %v46
    %v145 = vpop.f32.mrf.mxu0
    %v146 = vadd.f32 0.0, %v145
    %v147 = vpop.f32.mrf.mxu0
    %v148 = vpop.f32.mrf.mxu0
    %v149 = vadd.f32 0.0, %v148
    %v150 = vpop.f32.mrf.mxu0
    %151 = vdwg.mxu0
    %v152 = vadd.f32 %v44, %v146
    %v153 = vadd.f32 %v45, %v149
    %v154 = vld [vmem:[%s2] sm:$0x1]
    %v156 = vlaneseq
    %v157 = vshrl.u32 %v156, 7
    %v158 = vsub.s32 0, %v157
    %v159 = vrot.slane %v154, %v158
    %v161 = vadd.f32 %v152, %v159
    %v162 = vadd.f32 %v153, %v159
    %163 = vst [vmem:[#allocation7] sm:$0xff] %v161
    %164 = vst [vmem:[#allocation7 + $0x8] sm:$0xff] %v162
    // Predicated region
    $region22: #{tpu_custom_call.1} parent=1 // pred_check
      _
    $region23: #{tpu_custom_call.1} parent=1 // pred_check_branch
      %166 = sbr.rel (0) target = $region25
    $region24: #{tpu_custom_call.1} parent=1 // pred_region
      %s168 = ssub.s32 256, 256
      %169 = vsyncadd [#allocation4], %s168
      %s170 = sshll.u32 [#allocation7], 4
      %s171 = int_to_ptr.vmem [resolvable:$true] %s170
      %176 = dma.vmem_to_hbm [thread:$0]  %s171, 256, %s3, [#allocation4], 128, 128, 8
    $region25: #{tpu_custom_call.1} parent=1 // pred_fallthru
      _
    // Predicated region
    $region26: #{tpu_custom_call.1} parent=1 // pred_check
      _
    $region27: #{tpu_custom_call.1} parent=1 // pred_check_branch
      %178 = sbr.rel (0) target = $region29
    $region28: #{tpu_custom_call.1} parent=1 // pred_region
      %179 = dma.done [#allocation4], 256
    $region29: #{tpu_custom_call.1} parent=1 // pred_fallthru
      _
    %180 = vsyncpa [#allocation3], 1
    %181 = vsyncpa [#allocation6], 1
    %182 = vsyncpa [#allocation4], 1

</llo_original>
